<compile_context>
chip_gen: v7x
topology: tpu7x:2x2x1
jax: 0.10.0
libtpu: 0.0.40
codegen_flags: <defaults>
</compile_context>

<pallas_src>
import jax
import jax.numpy as jnp
from jax.experimental import pallas as pl
from jax.experimental.pallas import tpu as pltpu


_LANE_CANDIDATES = (1024, 512, 256, 128)  # lane-dense last dim (multiple of 128)
_TARGET_BLOCK_BYTES = 4 << 20             # ~4 MiB input block per grid step
_MIN_GRID_STEPS = 4                       # keep pipeline / both v7x TCs busy
_SMALL_BYTES = 1 << 20                    # below this, fused XLA beats launch cost
_VMEM_LIMIT_BYTES = 32 << 20              # 2 arrays x 2 buffers x 4 MiB = 16 MiB fits


def _round_up(n: int, m: int) -> int:
    return -(-n // m) * m


def _scale_exp_kernel(scale_ref, x_ref, o_ref):
    # scale_ref: SMEM (1,) scalar-prefetch ref; x_ref / o_ref: VMEM tiles.
    o_ref[...] = jnp.exp(x_ref[...] * scale_ref[0])


def scale_exp(x: jax.Array, scale: jax.Array, *, force_kernel: bool = False) -> jax.Array:
    """y = exp(x * scale), matching ScaleExp.forward.

    x:     float32 [N, C, H, W] (any shape works)
    scale: float32 [1] (learnable scalar parameter)
    force_kernel: force the Pallas path even for tiny inputs (testing only).
    """
    total = x.size
    itemsize = jnp.dtype(x.dtype).itemsize

    # Largest lane width that divides the element count -> reshape is a pure
    # view, every store is full-width, and no pad/slice HBM passes are needed.
    lane = next((l for l in _LANE_CANDIDATES if total % l == 0), None)

    small = total * itemsize < _SMALL_BYTES
    if lane is None or (small and not force_kernel):
        # Ragged totals (<128-element tail) and tiny tensors: a fused XLA
        # elementwise exp is already at the HBM roofline with no launch cost.
        return jnp.exp(x * scale[0])

    rows = total // lane
    x2d = x.reshape(rows, lane)

    # Sublane packing multiple for the second-to-last block dim
    # (8 for f32, 16 for bf16, 32 for int8).
    sub = max(8, 32 // itemsize)

    max_tile_r = max(sub, (_TARGET_BLOCK_BYTES // (itemsize * lane)) // sub * sub)
    if small:
        # Forced tiny tensors: a single block (block dims == array dims is OK).
        tile_r = min(rows, max_tile_r)
    else:
        # Guarantee a multi-step grid so DMA overlaps the EUP exp and the
        # "parallel" axis gives both v7x TensorCores work.  A ragged final
        # block is fine: OOB reads only feed a masked-out exp, writes masked.
        tile_r = min(max_tile_r, _round_up(pl.cdiv(rows, _MIN_GRID_STEPS), sub))

    grid = (pl.cdiv(rows, tile_r),)

    out2d = pl.pallas_call(
        _scale_exp_kernel,
        out_shape=jax.ShapeDtypeStruct((rows, lane), x2d.dtype),
        grid_spec=pltpu.PrefetchScalarGridSpec(
            num_scalar_prefetch=1,  # scale -> SMEM once, before the grid runs
            grid=grid,
            in_specs=[pl.BlockSpec((tile_r, lane), lambda i, s_ref: (i, 0))],
            out_specs=pl.BlockSpec((tile_r, lane), lambda i, s_ref: (i, 0)),
        ),
        compiler_params=pltpu.CompilerParams(
            dimension_semantics=("parallel",),   # shard steps across v7x's 2 TCs
            vmem_limit_bytes=_VMEM_LIMIT_BYTES,  # v5e default scoped-VMEM is 16 MiB
        ),
    )(scale, x2d)

    return out2d.reshape(x.shape)


if __name__ == "__main__":
    key = jax.random.PRNGKey(0)

    # Deterministic parameter init, matching nn.Parameter(torch.tensor([1.0])).
    scale = jnp.array([1.0], dtype=jnp.float32)

    # Required small shape (forced through the Pallas kernel to exercise it).
    x_small = jax.random.normal(key, (2, 4, 16, 16), dtype=jnp.float32)
    y_small = scale_exp(x_small, scale, force_kernel=True)
    jax.block_until_ready(y_small)
    ref_small = jnp.exp(x_small * scale[0])
    assert y_small.shape == x_small.shape and y_small.dtype == x_small.dtype
    assert jnp.allclose(y_small, ref_small, rtol=1e-6, atol=1e-6)

    # FCOS-level-like shape: total = 121600 is divisible by 256 but not 1024,
    # exercising the no-pad lane-width selection (forced, single block).
    x_med = jax.random.normal(jax.random.PRNGKey(1), (2, 4, 100, 152), dtype=jnp.float32) * 0.5
    y_med = scale_exp(x_med, scale, force_kernel=True)
    jax.block_until_ready(y_med)
    assert y_med.shape == x_med.shape and y_med.dtype == x_med.dtype
    assert jnp.allclose(y_med, jnp.exp(x_med * scale[0]), rtol=1e-6, atol=1e-6)

    # >= 1 MiB tensor: takes the kernel path naturally, multi-step grid with a
    # ragged final block (rows=475, lane=1024, tile_r=120 -> grid=(4,)).
    x_big = jax.random.normal(jax.random.PRNGKey(2), (8, 4, 100, 152), dtype=jnp.float32) * 0.25
    y_big = scale_exp(x_big, scale)
    jax.block_until_ready(y_big)
    assert jnp.allclose(y_big, jnp.exp(x_big * scale[0]), rtol=1e-6, atol=1e-6)

    # Fast path (tiny input, no forcing) must also match.
    y_fast = scale_exp(x_small, scale)
    jax.block_until_ready(y_fast)
    assert jnp.allclose(y_fast, ref_small, rtol=1e-6, atol=1e-6)

    print("KERNEL_OK")
</pallas_src>

<mosaic_0001>
module attributes {stable_mosaic.version = 11 : i64} {
  func.func @_scale_exp_kernel(%arg0: i32, %arg1: memref<1xf32, #tpu.memory_space<smem>>, %arg2: memref<2x1024xf32, #tpu.memory_space<vmem>>, %arg3: memref<2x1024xf32, #tpu.memory_space<vmem>>) attributes {dimension_semantics = [#tpu.dimension_semantics<parallel>], iteration_bounds = array<i64: 1>, scalar_prefetch = 1 : i64, scratch_operands = 0 : i64, tpu.core_type = #tpu.core_type<tc>, window_params = [{transform_indices = @transform_0, window_bounds = array<i64: 2, 1024>}, {transform_indices = @transform_1, window_bounds = array<i64: 2, 1024>}]} {
    %c0 = arith.constant 0 : index
    %c0_0 = arith.constant 0 : index
    %0 = vector.load %arg2[%c0, %c0_0] : memref<2x1024xf32, #tpu.memory_space<vmem>>, vector<2x1024xf32>
    %c0_1 = arith.constant 0 : index
    %1 = memref.load %arg1[%c0_1] : memref<1xf32, #tpu.memory_space<smem>>
    %2 = vector.broadcast %1 : f32 to vector<2x1024xf32>
    %3 = arith.mulf %0, %2 : vector<2x1024xf32>
    %4 = math.exp %3 : vector<2x1024xf32>
    %c0_2 = arith.constant 0 : index
    %c0_3 = arith.constant 0 : index
    %5 = vector.load %arg3[%c0_2, %c0_3] : memref<2x1024xf32, #tpu.memory_space<vmem>>, vector<2x1024xf32>
    tpu.vector_store %arg3[%c0_2, %c0_3], %4 {strides = array<i32>} : memref<2x1024xf32, #tpu.memory_space<vmem>>, vector<2x1024xf32>,
    return
  }
  func.func @transform_0(%arg0: i32, %arg1: memref<1xf32, #tpu.memory_space<smem>>) -> (i32, i32) {
    %c0_i32 = arith.constant 0 : i32
    %c0_i32_0 = arith.constant 0 : i32
    return %arg0, %c0_i32 : i32, i32
  }
  func.func @transform_1(%arg0: i32, %arg1: memref<1xf32, #tpu.memory_space<smem>>) -> (i32, i32) {
    %c0_i32 = arith.constant 0 : i32
    %c0_i32_0 = arith.constant 0 : i32
    return %arg0, %c0_i32 : i32, i32
  }
}

</mosaic_0001>

<llo_original>
// kernel: tpu_custom_call.1
$region0: #{tpu_custom_call.1}
  #allocation0 [shape = 'u32[]', space=smem, size = 0x4, offset = 0x4, fixed_abs, tag = 'smem constant byte address 0x4 - core index']
  #allocation1 [shape = 'u32[144,128]{1,0:T(1,128)}', space=vmem, size = 0x12000, scoped, tag = 'internal scratch']
  #allocation2 [shape = 's32[1]{0}', space=sflag, size = 0x4, scoped, tag = 'scoped memory for tpu_custom_call.1']
  #allocation3 [shape = 'f32[1]{0:T(128)S(6)}', space=smem, size = 0x200, scoped, tag = 'prefetched SMEM operand 0']
  %s0 = inlined_call_operand.<no memory space> [shape: f32[1], index: 0, kind: input, shape index: {}]
  %s1 = inlined_call_operand.hbm [shape: f32[2,1024], index: 1, kind: input, shape index: {}]
  %s2 = inlined_call_operand.hbm [shape: f32[2,1024], index: 2, kind: output, shape index: {}]
  %s3 = sld [smem:[#allocation0]]
  $region18: #{tpu_custom_call.1} parent=0
    _
  %s5 = ssub.s32 1, %s3
  %s6 = scalar_select 0, %s5, %s3
  %7 = sst [smem:[#allocation3]] %s0
  $region1: #{tpu_custom_call.1} parent=0
    #allocation4 [shape = 'u8[8192]{0}', space=vmem, size = 0x2000, scoped, tag = 'input window, operand 1, single buffered']
    #allocation5 [shape = 's32[1]{0}', space=sflag, size = 0x4, scoped, tag = 'scoped memory for tpu_custom_call.1']
    #allocation6 [shape = 's32[1]{0}', space=sflag, size = 0x4, scoped, tag = 'scoped memory for tpu_custom_call.1']
    #allocation7 [shape = 'u8[8192]{0}', space=vmem, size = 0x2000, scoped, tag = 'output window, operand 0, single buffered']
    %8 = vsyncpa [#allocation5], 0
    %9 = vsyncpa [#allocation6], 0
    // Predicated region
    $region2: #{tpu_custom_call.1} parent=1 // pred_check
      _
    $region3: #{tpu_custom_call.1} parent=1 // pred_check_branch
      %11 = sbr.rel (0) target = $region5
    $region4: #{tpu_custom_call.1} parent=1 // pred_region
      %s13 = ssub.s32 256, 256
      %14 = vsyncadd [#allocation5], %s13
      %s16 = sshll.u32 [#allocation4], 4
      %s17 = int_to_ptr.vmem [resolvable:$true] %s16
      %19 = dma.hbm_to_vmem [thread:$0]  %s1, 256, %s17, [#allocation5]
    $region5: #{tpu_custom_call.1} parent=1 // pred_fallthru
      _
    // Predicated region
    $region6: #{tpu_custom_call.1} parent=1 // pred_check
      _
    $region7: #{tpu_custom_call.1} parent=1 // pred_check_branch
      %21 = sbr.rel (0) target = $region9
    $region8: #{tpu_custom_call.1} parent=1 // pred_region
      %22 = dma.done [#allocation5], 256
    $region9: #{tpu_custom_call.1} parent=1 // pred_fallthru
      _
    %v23 = vld [vmem:[#allocation4] sm:$0xff]
    %v24 = vld [vmem:[#allocation4 + $0x8] sm:$0xff]
    %s25 = sld [smem:[#allocation3]]
    %v26 = vstv %s25
    %v27 = vmul.f32 %v23, %v26
    %v28 = vmul.f32 %v24, %v26
    %v29 = vmul.f32 %v27, 1.442695
    %v30 = vpow.pop %v29
    %v31 = vmul.f32 %v28, 1.442695
    %v32 = vpow.pop %v31
    %33 = vst [vmem:[#allocation7] sm:$0xff] %v30
    %34 = vst [vmem:[#allocation7 + $0x8] sm:$0xff] %v32
    // Predicated region
    $region10: #{tpu_custom_call.1} parent=1 // pred_check
      _
    $region11: #{tpu_custom_call.1} parent=1 // pred_check_branch
      %36 = sbr.rel (0) target = $region13
    $region12: #{tpu_custom_call.1} parent=1 // pred_region
      %s38 = ssub.s32 256, 256
      %39 = vsyncadd [#allocation6], %s38
      %s41 = sshll.u32 [#allocation7], 4
      %s42 = int_to_ptr.vmem [resolvable:$true] %s41
      %44 = dma.vmem_to_hbm [thread:$0]  %s42, 256, %s2, [#allocation6]
    $region13: #{tpu_custom_call.1} parent=1 // pred_fallthru
      _
    // Predicated region
    $region14: #{tpu_custom_call.1} parent=1 // pred_check
      _
    $region15: #{tpu_custom_call.1} parent=1 // pred_check_branch
      %46 = sbr.rel (0) target = $region17
    $region16: #{tpu_custom_call.1} parent=1 // pred_region
      %47 = dma.done [#allocation6], 256
    $region17: #{tpu_custom_call.1} parent=1 // pred_fallthru
      _
    %48 = vsyncpa [#allocation5], 1
    %49 = vsyncpa [#allocation6], 1

</llo_original>
